<compile_context>
chip_gen: v7x
topology: tpu7x:2x2x1
jax: 0.10.0
libtpu: 0.0.40
codegen_flags: <defaults>
</compile_context>

<pallas_src>
import jax
import jax.numpy as jnp
from jax.experimental import pallas as pl
from jax.experimental.pallas import tpu as pltpu

LANE = 128


def _round_up(x, m):
    return (x + m - 1) // m * m


def _cdiv(a, b):
    return (a + b - 1) // b


def nn_policy_kernel(x_ref, w1_ref, b1_ref, w2_ref, b2_ref, out_ref):
    # fc1 -> ReLU -> fc2, fully fused; weight tiles have constant index_maps so
    # they stay VMEM-resident across all batch grid steps.
    x = x_ref[...].astype(w1_ref.dtype)                       # in-kernel cast (no-op for f32)
    h = jnp.dot(x, w1_ref[...],
                preferred_element_type=jnp.float32)           # [tb, H_pad]  (MXU, f32 acc)
    h = jnp.maximum(h + b1_ref[...], 0.0)                     # bias + ReLU in f32 (VPU)
    av = jnp.dot(h.astype(w2_ref.dtype), w2_ref[...],
                 preferred_element_type=jnp.float32)          # [tb, A]      (MXU, f32 acc)
    out_ref[...] = (av + b2_ref[...]).astype(out_ref.dtype)   # narrow store: 4 lanes/row


def prepare_params(w1, b1, w2, b2, *, use_bf16=False):
    """One-time parameter prep (hoisted out of the hot path).

    Pads hidden 200 -> 256 with zero weights/bias (relu(0)=0 and zero w2 rows,
    so the math is exactly preserved) and optionally casts the matmul operands
    to bf16 (f32 accumulate/bias/ReLU stay in-kernel)."""
    state_dim, hidden = w1.shape
    _, num_actions = w2.shape
    hidden_pad = _round_up(hidden, LANE)      # 200 -> 256

    w1p = jnp.zeros((state_dim, hidden_pad), jnp.float32).at[:, :hidden].set(w1)
    b1p = jnp.zeros((1, hidden_pad), jnp.float32).at[:, :hidden].set(b1.reshape(1, -1))
    w2p = jnp.zeros((hidden_pad, num_actions), jnp.float32).at[:hidden, :].set(w2)
    b2p = b2.reshape(1, num_actions).astype(jnp.float32)

    if use_bf16:
        w1p = w1p.astype(jnp.bfloat16)
        w2p = w2p.astype(jnp.bfloat16)
    return w1p, b1p, w2p, b2p


def nn_policy_forward(x, w1p, b1p, w2p, b2p, *, block_b=2048):
    """x: [B, state_dim] f32.  (w1p, b1p, w2p, b2p) from prepare_params.
    Returns action values [B, num_actions] in f32."""
    B, state_dim = x.shape
    hidden_pad, num_actions = w2p.shape

    # Adaptive batch tiling: big tiles (amortize ~0.35us per grid step), at
    # least 2 steps when B is large enough to feed both v7x TensorCores, and
    # minimal batch padding (tb is just ceil(B / n_steps) rounded to 8 rows).
    n_steps = max(_cdiv(B, block_b), 1)
    if n_steps == 1 and B >= 512:
        n_steps = 2
    tb = _round_up(_cdiv(B, n_steps), 8)
    b_pad = _round_up(B, tb)
    xp = x if b_pad == B else jnp.pad(x, ((0, b_pad - B), (0, 0)))

    grid = (b_pad // tb,)
    flops = 2 * b_pad * (state_dim * hidden_pad + hidden_pad * num_actions)
    bytes_accessed = (xp.size * xp.dtype.itemsize
                      + w1p.size * w1p.dtype.itemsize
                      + w2p.size * w2p.dtype.itemsize
                      + b1p.size * 4 + b2p.size * 4
                      + b_pad * num_actions * 4)

    out = pl.pallas_call(
        nn_policy_kernel,
        out_shape=jax.ShapeDtypeStruct((b_pad, num_actions), jnp.float32),
        grid=grid,
        in_specs=[
            pl.BlockSpec((tb, state_dim), lambda i: (i, 0)),           # x: streamed over batch
            pl.BlockSpec((state_dim, hidden_pad), lambda i: (0, 0)),   # w1: VMEM-resident
            pl.BlockSpec((1, hidden_pad), lambda i: (0, 0)),           # b1: VMEM-resident
            pl.BlockSpec((hidden_pad, num_actions), lambda i: (0, 0)),  # w2: VMEM-resident
            pl.BlockSpec((1, num_actions), lambda i: (0, 0)),          # b2: VMEM-resident
        ],
        out_specs=pl.BlockSpec((tb, num_actions), lambda i: (i, 0)),   # narrow writeback
        compiler_params=pltpu.CompilerParams(
            dimension_semantics=("parallel",),     # shard batch tiles across TCs on v7x
            vmem_limit_bytes=32 * 1024 * 1024),    # headroom for [tb, 256] f32 hidden
        cost_estimate=pl.CostEstimate(
            flops=flops, transcendentals=0, bytes_accessed=bytes_accessed),
    )(xp, w1p, b1p, w2p, b2p)

    return out if b_pad == B else out[:B]


def init_params(key, state_dim, num_actions, hidden=200):
    """Deterministic init mimicking nn.Linear's default U(-1/sqrt(fan_in), 1/sqrt(fan_in))."""
    k1, k2, k3, k4 = jax.random.split(key, 4)
    bound1 = 1.0 / jnp.sqrt(jnp.float32(state_dim))
    bound2 = 1.0 / jnp.sqrt(jnp.float32(hidden))
    # Stored as [in, out] (already transposed vs. PyTorch's [out, in]).
    w1 = jax.random.uniform(k1, (state_dim, hidden), jnp.float32, -bound1, bound1)
    b1 = jax.random.uniform(k2, (hidden,), jnp.float32, -bound1, bound1)
    w2 = jax.random.uniform(k3, (hidden, num_actions), jnp.float32, -bound2, bound2)
    b2 = jax.random.uniform(k4, (num_actions,), jnp.float32, -bound2, bound2)
    return w1, b1, w2, b2


if __name__ == "__main__":
    key = jax.random.PRNGKey(0)
    k_in, k_params = jax.random.split(key)

    batch = 2
    state_dim = 16
    num_actions = 4

    x = jax.random.normal(k_in, (batch, state_dim), jnp.float32)
    w1, b1, w2, b2 = init_params(k_params, state_dim, num_actions)

    # One-time parameter prep (padding hoisted out of the hot path).
    w1p, b1p, w2p, b2p = prepare_params(w1, b1, w2, b2, use_bf16=False)

    out = nn_policy_forward(x, w1p, b1p, w2p, b2p)
    out = jax.block_until_ready(out)

    # Reference check in plain JAX (same math as the PyTorch module).
    ref = jnp.maximum(x @ w1 + b1[None, :], 0.0) @ w2 + b2[None, :]
    assert out.shape == (batch, num_actions)
    assert jnp.allclose(out, ref, atol=1e-5, rtol=1e-5)

    print("KERNEL_OK")
</pallas_src>

<mosaic_0001>
module attributes {stable_mosaic.version = 11 : i64} {
  func.func @nn_policy_kernel(%arg0: i32, %arg1: memref<8x16xf32, #tpu.memory_space<vmem>>, %arg2: memref<16x256xf32, #tpu.memory_space<vmem>>, %arg3: memref<1x256xf32, #tpu.memory_space<vmem>>, %arg4: memref<256x4xf32, #tpu.memory_space<vmem>>, %arg5: memref<1x4xf32, #tpu.memory_space<vmem>>, %arg6: memref<8x4xf32, #tpu.memory_space<vmem>>) attributes {dimension_semantics = [#tpu.dimension_semantics<parallel>], iteration_bounds = array<i64: 1>, scalar_prefetch = 0 : i64, scratch_operands = 0 : i64, tpu.core_type = #tpu.core_type<tc>, window_params = [{transform_indices = @transform_0, window_bounds = array<i64: 8, 16>}, {pipeline_mode = #tpu.pipeline_mode<synchronous>, transform_indices = @transform_1, window_bounds = array<i64: 16, 256>}, {pipeline_mode = #tpu.pipeline_mode<synchronous>, transform_indices = @transform_2, window_bounds = array<i64: 1, 256>}, {pipeline_mode = #tpu.pipeline_mode<synchronous>, transform_indices = @transform_3, window_bounds = array<i64: 256, 4>}, {pipeline_mode = #tpu.pipeline_mode<synchronous>, transform_indices = @transform_4, window_bounds = array<i64: 1, 4>}, {transform_indices = @transform_5, window_bounds = array<i64: 8, 4>}]} {
    %c0 = arith.constant 0 : index
    %c0_0 = arith.constant 0 : index
    %0 = vector.load %arg1[%c0, %c0_0] : memref<8x16xf32, #tpu.memory_space<vmem>>, vector<8x16xf32>
    %c0_1 = arith.constant 0 : index
    %c0_2 = arith.constant 0 : index
    %1 = vector.load %arg2[%c0_1, %c0_2] : memref<16x256xf32, #tpu.memory_space<vmem>>, vector<16x256xf32>
    %cst = arith.constant dense<0.000000e+00> : vector<8x256xf32>
    %2 = tpu.matmul %0, %1, %cst {dimension_numbers = #tpu.dot_dimension_numbers<[1], [0], [0], [1], [0, 0, 1, 1], [], []>} : vector<8x16xf32>, vector<16x256xf32>, vector<8x256xf32> -> vector<8x256xf32>
    %c0_3 = arith.constant 0 : index
    %c0_4 = arith.constant 0 : index
    %3 = vector.load %arg3[%c0_3, %c0_4] : memref<1x256xf32, #tpu.memory_space<vmem>>, vector<1x256xf32>
    %4 = vector.broadcast %3 : vector<1x256xf32> to vector<8x256xf32>
    %5 = arith.addf %2, %4 : vector<8x256xf32>
    %cst_5 = arith.constant 0.000000e+00 : f32
    %6 = vector.broadcast %cst_5 : f32 to vector<8x256xf32>
    %7 = arith.maximumf %5, %6 : vector<8x256xf32>
    %c0_6 = arith.constant 0 : index
    %c0_7 = arith.constant 0 : index
    %8 = vector.load %arg4[%c0_6, %c0_7] : memref<256x4xf32, #tpu.memory_space<vmem>>, vector<256x4xf32>
    %cst_8 = arith.constant dense<0.000000e+00> : vector<8x4xf32>
    %9 = tpu.matmul %7, %8, %cst_8 {dimension_numbers = #tpu.dot_dimension_numbers<[1], [0], [0], [1], [0, 0, 1, 1], [], []>} : vector<8x256xf32>, vector<256x4xf32>, vector<8x4xf32> -> vector<8x4xf32>
    %c0_9 = arith.constant 0 : index
    %c0_10 = arith.constant 0 : index
    %10 = vector.load %arg5[%c0_9, %c0_10] : memref<1x4xf32, #tpu.memory_space<vmem>>, vector<1x4xf32>
    %11 = vector.broadcast %10 : vector<1x4xf32> to vector<8x4xf32>
    %12 = arith.addf %9, %11 : vector<8x4xf32>
    %c0_11 = arith.constant 0 : index
    %c0_12 = arith.constant 0 : index
    %13 = vector.load %arg6[%c0_11, %c0_12] : memref<8x4xf32, #tpu.memory_space<vmem>>, vector<8x4xf32>
    tpu.vector_store %arg6[%c0_11, %c0_12], %12 {strides = array<i32>} : memref<8x4xf32, #tpu.memory_space<vmem>>, vector<8x4xf32>,
    return
  }
  func.func @transform_0(%arg0: i32) -> (i32, i32) {
    %c0_i32 = arith.constant 0 : i32
    %c0_i32_0 = arith.constant 0 : i32
    return %arg0, %c0_i32 : i32, i32
  }
  func.func @transform_1(%arg0: i32) -> (i32, i32) {
    %c0_i32 = arith.constant 0 : i32
    %c0_i32_0 = arith.constant 0 : i32
    %c0_i32_1 = arith.constant 0 : i32
    return %c0_i32, %c0_i32_0 : i32, i32
  }
  func.func @transform_2(%arg0: i32) -> (i32, i32) {
    %c0_i32 = arith.constant 0 : i32
    %c0_i32_0 = arith.constant 0 : i32
    %c0_i32_1 = arith.constant 0 : i32
    return %c0_i32, %c0_i32_0 : i32, i32
  }
  func.func @transform_3(%arg0: i32) -> (i32, i32) {
    %c0_i32 = arith.constant 0 : i32
    %c0_i32_0 = arith.constant 0 : i32
    %c0_i32_1 = arith.constant 0 : i32
    return %c0_i32, %c0_i32_0 : i32, i32
  }
  func.func @transform_4(%arg0: i32) -> (i32, i32) {
    %c0_i32 = arith.constant 0 : i32
    %c0_i32_0 = arith.constant 0 : i32
    %c0_i32_1 = arith.constant 0 : i32
    return %c0_i32, %c0_i32_0 : i32, i32
  }
  func.func @transform_5(%arg0: i32) -> (i32, i32) {
    %c0_i32 = arith.constant 0 : i32
    %c0_i32_0 = arith.constant 0 : i32
    return %arg0, %c0_i32 : i32, i32
  }
}

</mosaic_0001>

<llo_original>
// kernel: tpu_custom_call.1
$region0: #{tpu_custom_call.1}
  #allocation0 [shape = 'u32[]', space=smem, size = 0x4, offset = 0x4, fixed_abs, tag = 'smem constant byte address 0x4 - core index']
  #allocation1 [shape = 'u32[144,128]{1,0:T(1,128)}', space=vmem, size = 0x12000, scoped, tag = 'internal scratch']
  %s0 = inlined_call_operand.vmem [shape: f32[8,16], index: 0, kind: input, shape index: {}]
  %s1 = inlined_call_operand.vmem [shape: f32[16,256], index: 1, kind: input, shape index: {}]
  %s2 = inlined_call_operand.vmem [shape: f32[1,256], index: 2, kind: input, shape index: {}]
  %s3 = inlined_call_operand.vmem [shape: f32[256,4], index: 3, kind: input, shape index: {}]
  %s4 = inlined_call_operand.vmem [shape: f32[1,4], index: 4, kind: input, shape index: {}]
  %s5 = inlined_call_operand.vmem [shape: f32[8,4], index: 5, kind: output, shape index: {}]
  %s6 = sld [smem:[#allocation0]]
  $region30: #{tpu_custom_call.1} parent=0
    _
  %s8 = ssub.s32 1, %s6
  %s9 = scalar_select 0, %s8, %s6
  // Predicated region
  $region2: #{tpu_custom_call.1} parent=0 // pred_check
    _
  $region3: #{tpu_custom_call.1} parent=0 // pred_check_branch
    %11 = sbr.rel (0) target = $region5
  $region4: #{tpu_custom_call.1} parent=0 // pred_region
    _
  $region5: #{tpu_custom_call.1} parent=0 // pred_fallthru
    _
  // Predicated region
  $region6: #{tpu_custom_call.1} parent=0 // pred_check
    _
  $region7: #{tpu_custom_call.1} parent=0 // pred_check_branch
    %13 = sbr.rel (0) target = $region9
  $region8: #{tpu_custom_call.1} parent=0 // pred_region
    _
  $region9: #{tpu_custom_call.1} parent=0 // pred_fallthru
    _
  // Predicated region
  $region10: #{tpu_custom_call.1} parent=0 // pred_check
    _
  $region11: #{tpu_custom_call.1} parent=0 // pred_check_branch
    %15 = sbr.rel (0) target = $region13
  $region12: #{tpu_custom_call.1} parent=0 // pred_region
    _
  $region13: #{tpu_custom_call.1} parent=0 // pred_fallthru
    _
  // Predicated region
  $region14: #{tpu_custom_call.1} parent=0 // pred_check
    _
  $region15: #{tpu_custom_call.1} parent=0 // pred_check_branch
    %17 = sbr.rel (0) target = $region17
  $region16: #{tpu_custom_call.1} parent=0 // pred_region
    _
  $region17: #{tpu_custom_call.1} parent=0 // pred_fallthru
    _
  // Predicated region
  $region18: #{tpu_custom_call.1} parent=0 // pred_check
    _
  $region19: #{tpu_custom_call.1} parent=0 // pred_check_branch
    %19 = sbr.rel (0) target = $region21
  $region20: #{tpu_custom_call.1} parent=0 // pred_region
    _
  $region21: #{tpu_custom_call.1} parent=0 // pred_fallthru
    _
  %v20 = vld [vmem:[%s0] sm:$0xff]
  %v21 = vld [vmem:[%s1] sm:$0xff]
  %v22 = vld [vmem:[%s1 + $0x8] sm:$0xff]
  %v23 = vld [vmem:[%s1 + $0x10] sm:$0xff]
  %v24 = vld [vmem:[%s1 + $0x18] sm:$0xff]
  %v25 = vld [vmem:[%s2] sm:$0x3]
  %v27 = vlaneseq
  %v28 = vshrl.u32 %v27, 7
  %v29 = vsub.s32 0, %v28
  %v30 = vrot.slane %v25, %v29
  %v31 = vlaneseq
  %v32 = vshrl.u32 %v31, 7
  %v33 = vsub.s32 1, %v32
  %v34 = vrot.slane %v25, %v33
  %vm37 = vcmask 130048
  %v39 = vsel %vm37, %v20, 0
  %41 = vmatprep.subr.mxu0 %v22
  %42 = vmatpush1.msra.mxu0 %v21
  %43 = vmatprep.subr.mxu0 %v24
  %44 = vmatpush1.msra.mxu0 %v23
  %45 = vmatprep.subr.mxu0 0.0
  %46 = vmatpush1.msra.mxu0 0.0
  %47 = vmatprep.subr.mxu0 0.0
  %48 = vmatpush1.msra.mxu0 0.0
  %49 = vmatprep.subr.mxu0 0.0
  %50 = vmatpush1.msra.mxu0 0.0
  %51 = vmatprep.subr.mxu0 0.0
  %52 = vmatpush1.msra.mxu0 0.0
  %53 = vmatprep.subr.mxu0 0.0
  %54 = vmatpush1.msra.mxu0 0.0
  %55 = vmatprep.subr.mxu0 0.0
  %56 = vmatpush1.msra.mxu0 0.0
  %57 = vmatprep.subr.mxu0 0.0
  %58 = vmatpush1.msra.mxu0 0.0
  %59 = vmatprep.subr.mxu0 0.0
  %60 = vmatpush1.msra.mxu0 0.0
  %61 = vmatprep.subr.mxu0 0.0
  %62 = vmatpush1.msra.mxu0 0.0
  %63 = vmatprep.subr.mxu0 0.0
  %64 = vmatpush1.msra.mxu0 0.0
  %65 = vmatprep.subr.mxu0 0.0
  %66 = vmatpush1.msra.mxu0 0.0
  %67 = vmatprep.subr.mxu0 0.0
  %68 = vmatpush1.msra.mxu0 0.0
  %69 = vmatprep.subr.mxu0 0.0
  %70 = vmatpush1.msra.mxu0 0.0
  %71 = vmatprep.subr.mxu0 0.0
  %72 = vmatpush1.msra.mxu0 0.0
  %73 = vmatprep.subr.mxu0 0.0
  %74 = vmatpush1.msra.mxu0 0.0
  %75 = vmatprep.subr.mxu0 0.0
  %76 = vmatpush1.msra.mxu0 0.0
  %77 = vmatprep.subr.mxu0 0.0
  %78 = vmatpush1.msra.mxu0 0.0
  %79 = vmatprep.subr.mxu0 0.0
  %80 = vmatpush1.msra.mxu0 0.0
  %81 = vmatprep.subr.mxu0 0.0
  %82 = vmatpush1.msra.mxu0 0.0
  %83 = vmatprep.subr.mxu0 0.0
  %84 = vmatpush1.msra.mxu0 0.0
  %85 = vmatprep.subr.mxu0 0.0
  %86 = vmatpush1.msra.mxu0 0.0
  %87 = vmatprep.subr.mxu0 0.0
  %88 = vmatpush1.msra.mxu0 0.0
  %89 = vmatprep.subr.mxu0 0.0
  %90 = vmatpush1.msra.mxu0 0.0
  %91 = vmatprep.subr.mxu0 0.0
  %92 = vmatpush1.msra.mxu0 0.0
  %93 = vmatprep.subr.mxu0 0.0
  %94 = vmatpush1.msra.mxu0 0.0
  %95 = vmatprep.subr.mxu0 0.0
  %96 = vmatpush1.msra.mxu0 0.0
  %97 = vmatprep.subr.mxu0 0.0
  %98 = vmatpush1.msra.mxu0 0.0
  %99 = vmatprep.subr.mxu0 0.0
  %100 = vmatpush1.msra.mxu0 0.0
  %101 = vmatprep.subr.mxu0 0.0
  %102 = vmatpush1.msra.mxu0 0.0
  %103 = vmatprep.subr.mxu0 0.0
  %104 = vmatpush1.msra.mxu0 0.0
  %105 = vmatprep.mubr.f32.mxu0 0.0
  %106 = vmatmul.mubr.f32.gmra.mrb[0].mxu0 %v39
  %v107 = vpop.f32.mrb[0].mxu0
  %v108 = vadd.f32 %v30, %v107
  %v109 = vpop.f32.mrb[0].mxu0
  %v110 = vadd.f32 %v34, %v109
  %111 = vdwg.mxu0
  %v112 = vmax.f32 %v108, 0.0
  %v113 = vmax.f32 %v110, 0.0
  %v114 = vld [vmem:[%s3] sm:$0xff]
  %v115 = vld [vmem:[%s3 + $0x8] sm:$0xff]
  %v116 = vld [vmem:[%s3 + $0x10] sm:$0xff]
  %v117 = vld [vmem:[%s3 + $0x18] sm:$0xff]
  %v118 = vld [vmem:[%s3 + $0x20] sm:$0xff]
  %v119 = vld [vmem:[%s3 + $0x28] sm:$0xff]
  %v120 = vld [vmem:[%s3 + $0x30] sm:$0xff]
  %v121 = vld [vmem:[%s3 + $0x38] sm:$0xff]
  %v122 = vld [vmem:[%s3 + $0x40] sm:$0xff]
  %v123 = vld [vmem:[%s3 + $0x48] sm:$0xff]
  %v124 = vld [vmem:[%s3 + $0x50] sm:$0xff]
  %v125 = vld [vmem:[%s3 + $0x58] sm:$0xff]
  %v126 = vld [vmem:[%s3 + $0x60] sm:$0xff]
  %v127 = vld [vmem:[%s3 + $0x68] sm:$0xff]
  %v128 = vld [vmem:[%s3 + $0x70] sm:$0xff]
  %v129 = vld [vmem:[%s3 + $0x78] sm:$0xff]
  %v130 = vld [vmem:[%s3 + $0x80] sm:$0xff]
  %v131 = vld [vmem:[%s3 + $0x88] sm:$0xff]
  %v132 = vld [vmem:[%s3 + $0x90] sm:$0xff]
  %v133 = vld [vmem:[%s3 + $0x98] sm:$0xff]
  %v134 = vld [vmem:[%s3 + $0xa0] sm:$0xff]
  %v135 = vld [vmem:[%s3 + $0xa8] sm:$0xff]
  %v136 = vld [vmem:[%s3 + $0xb0] sm:$0xff]
  %v137 = vld [vmem:[%s3 + $0xb8] sm:$0xff]
  %v138 = vld [vmem:[%s3 + $0xc0] sm:$0xff]
  %v139 = vld [vmem:[%s3 + $0xc8] sm:$0xff]
  %v140 = vld [vmem:[%s3 + $0xd0] sm:$0xff]
  %v141 = vld [vmem:[%s3 + $0xd8] sm:$0xff]
  %v142 = vld [vmem:[%s3 + $0xe0] sm:$0xff]
  %v143 = vld [vmem:[%s3 + $0xe8] sm:$0xff]
  %v144 = vld [vmem:[%s3 + $0xf0] sm:$0xff]
  %v145 = vld [vmem:[%s3 + $0xf8] sm:$0xff]
  %v146 = vld [vmem:[%s4] sm:$0x1]
  %v148 = vlaneseq
  %v149 = vshrl.u32 %v148, 7
  %v150 = vsub.s32 0, %v149
  %v151 = vrot.slane %v146, %v150
  %153 = vmatprep.subr.mxu0 0.0
  %154 = vmatpush1.msra.mxu0 %v114
  %155 = vmatprep.subr.mxu0 0.0
  %156 = vmatpush1.msra.mxu0 %v115
  %157 = vmatprep.subr.mxu0 0.0
  %158 = vmatpush1.msra.mxu0 %v116
  %159 = vmatprep.subr.mxu0 0.0
  %160 = vmatpush1.msra.mxu0 %v117
  %161 = vmatprep.subr.mxu0 0.0
  %162 = vmatpush1.msra.mxu0 %v118
  %163 = vmatprep.subr.mxu0 0.0
  %164 = vmatpush1.msra.mxu0 %v119
  %165 = vmatprep.subr.mxu0 0.0
  %166 = vmatpush1.msra.mxu0 %v120
  %167 = vmatprep.subr.mxu0 0.0
  %168 = vmatpush1.msra.mxu0 %v121
  %169 = vmatprep.subr.mxu0 0.0
  %170 = vmatpush1.msra.mxu0 %v122
  %171 = vmatprep.subr.mxu0 0.0
  %172 = vmatpush1.msra.mxu0 %v123
  %173 = vmatprep.subr.mxu0 0.0
  %174 = vmatpush1.msra.mxu0 %v124
  %175 = vmatprep.subr.mxu0 0.0
  %176 = vmatpush1.msra.mxu0 %v125
  %177 = vmatprep.subr.mxu0 0.0
  %178 = vmatpush1.msra.mxu0 %v126
  %179 = vmatprep.subr.mxu0 0.0
  %180 = vmatpush1.msra.mxu0 %v127
  %181 = vmatprep.subr.mxu0 0.0
  %182 = vmatpush1.msra.mxu0 %v128
  %183 = vmatprep.subr.mxu0 0.0
  %184 = vmatpush1.msra.mxu0 %v129
  %185 = vmatprep.subr.mxu0 0.0
  %186 = vmatpush1.msra.mxu0 %v130
  %187 = vmatprep.subr.mxu0 0.0
  %188 = vmatpush1.msra.mxu0 %v131
  %189 = vmatprep.subr.mxu0 0.0
  %190 = vmatpush1.msra.mxu0 %v132
  %191 = vmatprep.subr.mxu0 0.0
  %192 = vmatpush1.msra.mxu0 %v133
  %193 = vmatprep.subr.mxu0 0.0
  %194 = vmatpush1.msra.mxu0 %v134
  %195 = vmatprep.subr.mxu0 0.0
  %196 = vmatpush1.msra.mxu0 %v135
  %197 = vmatprep.subr.mxu0 0.0
  %198 = vmatpush1.msra.mxu0 %v136
  %199 = vmatprep.subr.mxu0 0.0
  %200 = vmatpush1.msra.mxu0 %v137
  %201 = vmatprep.subr.mxu0 0.0
  %202 = vmatpush1.msra.mxu0 %v138
  %203 = vmatprep.subr.mxu0 0.0
  %204 = vmatpush1.msra.mxu0 %v139
  %205 = vmatprep.subr.mxu0 0.0
  %206 = vmatpush1.msra.mxu0 %v140
  %207 = vmatprep.subr.mxu0 0.0
  %208 = vmatpush1.msra.mxu0 %v141
  %209 = vmatprep.subr.mxu0 0.0
  %210 = vmatpush1.msra.mxu0 %v142
  %211 = vmatprep.subr.mxu0 0.0
  %212 = vmatpush1.msra.mxu0 %v143
  %213 = vmatprep.subr.mxu0 0.0
  %214 = vmatpush1.msra.mxu0 %v144
  %215 = vmatprep.subr.mxu0 0.0
  %216 = vmatpush1.msra.mxu0 %v145
  %217 = vmatprep.mubr.f32.mxu0 %v113
  %218 = vmatmul.mubr.f32.gmra.mrb[0].mxu0 %v112
  %v219 = vpop.f32.mrb[0].mxu0
  %v220 = vadd.f32 %v151, %v219
  %v221 = vpop.f32.mrb[0].mxu0
  %222 = vdwg.mxu0
  %vm223 = vcmask 31744
  %224 = vst.msk [vmem:[%s5] sm:$0xff] %vm223, %v220
  // Predicated region
  $region22: #{tpu_custom_call.1} parent=0 // pred_check
    _
  $region23: #{tpu_custom_call.1} parent=0 // pred_check_branch
    %226 = sbr.rel (0) target = $region25
  $region24: #{tpu_custom_call.1} parent=0 // pred_region
    _
  $region25: #{tpu_custom_call.1} parent=0 // pred_fallthru
    _
  // Predicated region
  $region26: #{tpu_custom_call.1} parent=0 // pred_check
    _
  $region27: #{tpu_custom_call.1} parent=0 // pred_check_branch
    %228 = sbr.rel (0) target = $region29
  $region28: #{tpu_custom_call.1} parent=0 // pred_region
    _
  $region29: #{tpu_custom_call.1} parent=0 // pred_fallthru
    _

</llo_original>
